<compile_context>
chip_gen: v5e
topology: v5e:2x2
jax: 0.10.0
libtpu: 0.0.40
codegen_flags: <defaults>
</compile_context>

<pallas_src>
import jax
import jax.numpy as jnp
from jax.experimental import pallas as pl
from jax.experimental.pallas import tpu as pltpu


def _fc_block_kernel(x_ref, w_ref, shift_ref, o_ref):
    # x_ref:     (1, C_in, TILE_L)  one batch element, one L tile
    # w_ref:     (C_out, C_in)      folded weight  (bn_scale * conv_weight)
    # shift_ref: (C_out, 1)         folded shift   (bn_shift + bn_scale * conv_bias)
    # o_ref:     (1, C_out, TILE_L) lane-dense output tile
    x = x_ref[0]                                                 # (C_in, TILE_L)
    w = w_ref[...]                                               # (C_out, C_in)
    y = jnp.dot(w, x, preferred_element_type=jnp.float32)       # MXU
    y = y + shift_ref[...]                                       # broadcast over lanes
    o_ref[0] = jnp.maximum(y, 0.0).astype(o_ref.dtype)          # ReLU


def fc_block_forward(x_ncl, weight, bias, gamma, beta, running_mean,
                     running_var, eps=1e-5, tile_l=512):
    """x_ncl: (B, C_in, L) float32, same layout as the PyTorch module input."""
    B, C_in, L = x_ncl.shape
    C_out = weight.shape[0]

    # Fold BatchNorm (eval mode) + conv bias into a single affine applied
    # after the matmul: relu((scale*W) @ x + (scale*bias + (beta - mean*scale))).
    scale = gamma / jnp.sqrt(running_var + eps)                  # (C_out,)
    shift = beta - running_mean * scale                          # (C_out,)
    w2d = weight.reshape(C_out, C_in)
    w_folded = w2d * scale[:, None]                              # (C_out, C_in)
    shift_folded = (shift + bias * scale).reshape(C_out, 1)      # (C_out, 1)

    # Lane-dense tiling along L: tile must be a multiple of 128 or the full L.
    if L % 128 == 0:
        tl = min(L, max(128, (tile_l // 128) * 128))
    else:
        tl = L
    grid = (B, pl.cdiv(L, tl))

    out = pl.pallas_call(
        _fc_block_kernel,
        out_shape=jax.ShapeDtypeStruct((B, C_out, L), x_ncl.dtype),
        grid_spec=pltpu.PrefetchScalarGridSpec(
            num_scalar_prefetch=0,
            grid=grid,
            in_specs=[
                pl.BlockSpec((1, C_in, tl), lambda b, l: (b, 0, l)),
                pl.BlockSpec((C_out, C_in), lambda b, l: (0, 0)),
                pl.BlockSpec((C_out, 1), lambda b, l: (0, 0)),
            ],
            out_specs=pl.BlockSpec((1, C_out, tl), lambda b, l: (b, 0, l)),
        ),
        compiler_params=pltpu.CompilerParams(
            dimension_semantics=("parallel", "parallel"),
            vmem_limit_bytes=64 * 1024 * 1024,
        ),
    )(x_ncl, w_folded, shift_folded)
    return out


def _reference_forward(x_ncl, weight, bias, gamma, beta, running_mean,
                       running_var, eps=1e-5):
    # Pure-JAX reference of Conv1d(k=1) + BatchNorm1d(eval) + ReLU.
    y = jnp.einsum("bil,oi->bol", x_ncl, weight.reshape(weight.shape[0], -1))
    y = y + bias[None, :, None]
    y = (y - running_mean[None, :, None]) / jnp.sqrt(
        running_var[None, :, None] + eps)
    y = y * gamma[None, :, None] + beta[None, :, None]
    return jnp.maximum(y, 0.0)


if __name__ == "__main__":
    # FCBlock(in_size=4, out_size=32) in eval mode.
    B, C_in, C_out = 2, 4, 32

    key = jax.random.PRNGKey(0)
    kw, kb, kg, kbe, km, kv, kx1, kx2 = jax.random.split(key, 8)

    # Conv1d(in_size, out_size, 1): weight (out, in, 1), bias (out,)
    weight = jax.random.normal(kw, (C_out, C_in, 1), dtype=jnp.float32) * 0.1
    bias = jax.random.normal(kb, (C_out,), dtype=jnp.float32) * 0.1

    # BatchNorm1d(out_size) parameters / running stats (eval mode).
    gamma = 1.0 + 0.1 * jax.random.normal(kg, (C_out,), dtype=jnp.float32)
    beta = 0.1 * jax.random.normal(kbe, (C_out,), dtype=jnp.float32)
    running_mean = 0.1 * jax.random.normal(km, (C_out,), dtype=jnp.float32)
    running_var = jnp.abs(
        1.0 + 0.1 * jax.random.normal(kv, (C_out,), dtype=jnp.float32))

    # Case 1: tiny L (single full-extent tile, like the module's small input).
    # Case 2: L multiple of 128 with a small tile to exercise the (B, L) grid
    #         and pipelined lane-dense stores.
    for kx, L, tl in ((kx1, 16, 512), (kx2, 256, 128)):
        x = jax.random.normal(kx, (B, C_in, L), dtype=jnp.float32)
        out = fc_block_forward(x, weight, bias, gamma, beta, running_mean,
                               running_var, tile_l=tl)
        out = jax.block_until_ready(out)
        ref = _reference_forward(x, weight, bias, gamma, beta, running_mean,
                                 running_var)
        assert out.shape == (B, C_out, L)
        assert jnp.allclose(out, ref, atol=1e-5, rtol=1e-5)

    print("KERNEL_OK")
</pallas_src>

<mosaic_0001>
module attributes {stable_mosaic.version = 11 : i64} {
  func.func @_fc_block_kernel(%arg0: i32, %arg1: i32, %arg2: memref<1x4x16xf32, #tpu.memory_space<vmem>>, %arg3: memref<32x4xf32, #tpu.memory_space<vmem>>, %arg4: memref<32x1xf32, #tpu.memory_space<vmem>>, %arg5: memref<1x32x16xf32, #tpu.memory_space<vmem>>) attributes {dimension_semantics = [#tpu.dimension_semantics<parallel>, #tpu.dimension_semantics<parallel>], iteration_bounds = array<i64: 2, 1>, scalar_prefetch = 0 : i64, scratch_operands = 0 : i64, tpu.core_type = #tpu.core_type<tc>, window_params = [{transform_indices = @transform_0, window_bounds = array<i64: 1, 4, 16>}, {pipeline_mode = #tpu.pipeline_mode<synchronous>, transform_indices = @transform_1, window_bounds = array<i64: 32, 4>}, {pipeline_mode = #tpu.pipeline_mode<synchronous>, transform_indices = @transform_2, window_bounds = array<i64: 32, 1>}, {transform_indices = @transform_3, window_bounds = array<i64: 1, 32, 16>}]} {
    %c0 = arith.constant 0 : index
    %c0_0 = arith.constant 0 : index
    %c0_1 = arith.constant 0 : index
    %0 = vector.load %arg2[%c0, %c0_0, %c0_1] : memref<1x4x16xf32, #tpu.memory_space<vmem>>, vector<1x4x16xf32>
    %1 = vector.shape_cast %0 : vector<1x4x16xf32> to vector<4x16xf32>
    %c0_2 = arith.constant 0 : index
    %c0_3 = arith.constant 0 : index
    %2 = vector.load %arg3[%c0_2, %c0_3] : memref<32x4xf32, #tpu.memory_space<vmem>>, vector<32x4xf32>
    %cst = arith.constant dense<0.000000e+00> : vector<32x16xf32>
    %3 = tpu.matmul %2, %1, %cst {dimension_numbers = #tpu.dot_dimension_numbers<[1], [0], [0], [1], [0, 0, 1, 1], [], []>} : vector<32x4xf32>, vector<4x16xf32>, vector<32x16xf32> -> vector<32x16xf32>
    %c0_4 = arith.constant 0 : index
    %c0_5 = arith.constant 0 : index
    %4 = vector.load %arg4[%c0_4, %c0_5] : memref<32x1xf32, #tpu.memory_space<vmem>>, vector<32x1xf32>
    %5 = vector.broadcast %4 : vector<32x1xf32> to vector<32x16xf32>
    %6 = arith.addf %3, %5 : vector<32x16xf32>
    %cst_6 = arith.constant 0.000000e+00 : f32
    %7 = vector.broadcast %cst_6 : f32 to vector<32x16xf32>
    %8 = arith.maximumf %6, %7 : vector<32x16xf32>
    %c0_7 = arith.constant 0 : index
    %c0_8 = arith.constant 0 : index
    %c0_9 = arith.constant 0 : index
    %9 = vector.load %arg5[%c0_7, %c0_8, %c0_9] : memref<1x32x16xf32, #tpu.memory_space<vmem>>, vector<1x32x16xf32>
    %10 = vector.shape_cast %9 : vector<1x32x16xf32> to vector<32x16xf32>
    %11 = vector.shape_cast %8 : vector<32x16xf32> to vector<1x32x16xf32>
    tpu.vector_store %arg5[%c0_7, %c0_8, %c0_9], %11 {strides = array<i32>} : memref<1x32x16xf32, #tpu.memory_space<vmem>>, vector<1x32x16xf32>,
    return
  }
  func.func @transform_0(%arg0: i32, %arg1: i32) -> (i32, i32, i32) {
    %c0_i32 = arith.constant 0 : i32
    %c0_i32_0 = arith.constant 0 : i32
    return %arg0, %c0_i32, %arg1 : i32, i32, i32
  }
  func.func @transform_1(%arg0: i32, %arg1: i32) -> (i32, i32) {
    %c0_i32 = arith.constant 0 : i32
    %c0_i32_0 = arith.constant 0 : i32
    %c0_i32_1 = arith.constant 0 : i32
    return %c0_i32, %c0_i32_0 : i32, i32
  }
  func.func @transform_2(%arg0: i32, %arg1: i32) -> (i32, i32) {
    %c0_i32 = arith.constant 0 : i32
    %c0_i32_0 = arith.constant 0 : i32
    %c0_i32_1 = arith.constant 0 : i32
    return %c0_i32, %c0_i32_0 : i32, i32
  }
  func.func @transform_3(%arg0: i32, %arg1: i32) -> (i32, i32, i32) {
    %c0_i32 = arith.constant 0 : i32
    %c0_i32_0 = arith.constant 0 : i32
    return %arg0, %c0_i32, %arg1 : i32, i32, i32
  }
}

</mosaic_0001>

<llo_original>
// kernel: tpu_custom_call.1
$region0: #{tpu_custom_call.1}
  #allocation0 [shape = 'u32[]', space=smem, size = 0x4, offset = 0x4, fixed_abs, tag = 'smem constant byte address 0x4 - core index']
  #allocation1 [shape = 'u32[72,128]{1,0:T(1,128)}', space=vmem, size = 0x9000, scoped, tag = 'internal scratch']
  %s0 = inlined_call_operand.vmem [shape: f32[2,4,16], index: 0, kind: input, shape index: {}]
  %s1 = inlined_call_operand.vmem [shape: f32[32,4], index: 1, kind: input, shape index: {}]
  %s2 = inlined_call_operand.vmem [shape: f32[32,1], index: 2, kind: input, shape index: {}]
  %s3 = inlined_call_operand.vmem [shape: f32[2,32,16], index: 3, kind: output, shape index: {}]
  %s4 = sld [smem:[#allocation0]]
  $region45: #{tpu_custom_call.1} parent=0
    _
  %s6 = ssub.s32 1, %s4
  %s7 = scalar_select 0, %s6, %s4
  loop: start=0, step=1, limit=4
  $region2: #{tpu_custom_call.1} parent=0 // loop_pre_header
    _
  $region3: #{tpu_custom_call.1} parent=0 // loop_header
    %s9 = sphi 0, %s13
    %p10 = scmp.ge.s32.totalorder %s9, 4
    %s16 = sphi 0, %s28
    %s17 = sphi 0, %s24
    %s18 = sphi 0, %s16
    %s19 = sphi 0, %s17
    %s20 = sphi 0, %s18
    %s21 = sphi 0, %s19
    %s33 = sphi 0, %s35
    %s36 = sphi 0, %s33
    %s37 = sphi 0, %s36
    %s53 = sphi 0, %s37
    %s57 = sphi 0, %s57
    %s59 = sphi 0, %s57
    %s60 = sphi 0, %s59
    %s74 = sphi 0, %s60
    %s78 = sphi 0, %s78
    %s80 = sphi 0, %s78
    %s81 = sphi 0, %s80
    %s95 = sphi 0, %s81
    %s103 = sphi 0, %s105
    %s106 = sphi 0, %s103
    %s107 = sphi 0, %s106
    %s123 = sphi 0, %s107
  $region4: #{tpu_custom_call.1} parent=0 // loop_header_branch
    %12 = sbr.rel (%p10) target = $region8
  $region5: #{tpu_custom_call.1} parent=0 // loop_body
    %s14 = ssub.s32 %s9, 1
    %s15 = ssub.s32 %s9, 2
    %s22 = sadd.s32 1, %s17
    %p23 = scmp.ge.s32.totalorder %s22, 1
    %s24 = scalar_select %p23, 0, %s22
    %s25 = sadd.s32 1, %s16
    %s26 = scalar_select %p23, %s25, %s16
    %p27 = scmp.ge.s32.totalorder %s26, 2
    %s28 = scalar_select %p27, 0, %s26
    %s29 = ssub.s32 %s16, %s28
    %s30 = ssub.s32 %s17, %s24
    %s31 = sor.u32 %s29, %s30
    %p32 = scmp.eq.s32.totalorder %s31, 0
    %s34 = sadd.s32 %s33, 1
    %s35 = scalar_select %p32, %s33, %s34
    %p38 = pneg %p32
    %p39 = scmp.eq.s32.totalorder %s9, 1
    %p40 = por %p38, %p39
    %p41 = scmp.ne.s32.totalorder %s33, %s36
    %p42 = scmp.eq.s32.totalorder %s9, 0
    %p43 = por %p41, %p42
    %p44 = scmp.ne.s32.totalorder %s33, %s36
    %p45 = scmp.eq.s32.totalorder %s14, 1
    %p46 = por %p44, %p45
    %p47 = scmp.ne.s32.totalorder %s36, %s37
    %p48 = scmp.eq.s32.totalorder %s14, 0
    %p49 = por %p47, %p48
    %p50 = scmp.ne.s32.totalorder %s36, %s37
    %p51 = scmp.eq.s32.totalorder %s15, 1
    %p52 = por %p50, %p51
    %p54 = scmp.ne.s32.totalorder %s37, %s53
    %p55 = scmp.eq.s32.totalorder %s15, 0
    %p56 = por %p54, %p55
    %s58 = sadd.s32 %s57, 1
    %p61 = scmp.eq.s32.totalorder %s9, 1
    %p62 = scmp.ne.s32.totalorder %s57, %s59
    %p63 = scmp.eq.s32.totalorder %s9, 0
    %p64 = por %p62, %p63
    %p65 = scmp.ne.s32.totalorder %s57, %s59
    %p66 = scmp.eq.s32.totalorder %s14, 1
    %p67 = por %p65, %p66
    %p68 = scmp.ne.s32.totalorder %s59, %s60
    %p69 = scmp.eq.s32.totalorder %s14, 0
    %p70 = por %p68, %p69
    %p71 = scmp.ne.s32.totalorder %s59, %s60
    %p72 = scmp.eq.s32.totalorder %s15, 1
    %p73 = por %p71, %p72
    %p75 = scmp.ne.s32.totalorder %s60, %s74
    %p76 = scmp.eq.s32.totalorder %s15, 0
    %p77 = por %p75, %p76
    %s79 = sadd.s32 %s78, 1
    %p82 = scmp.eq.s32.totalorder %s9, 1
    %p83 = scmp.ne.s32.totalorder %s78, %s80
    %p84 = scmp.eq.s32.totalorder %s9, 0
    %p85 = por %p83, %p84
    %p86 = scmp.ne.s32.totalorder %s78, %s80
    %p87 = scmp.eq.s32.totalorder %s14, 1
    %p88 = por %p86, %p87
    %p89 = scmp.ne.s32.totalorder %s80, %s81
    %p90 = scmp.eq.s32.totalorder %s14, 0
    %p91 = por %p89, %p90
    %p92 = scmp.ne.s32.totalorder %s80, %s81
    %p93 = scmp.eq.s32.totalorder %s15, 1
    %p94 = por %p92, %p93
    %p96 = scmp.ne.s32.totalorder %s81, %s95
    %p97 = scmp.eq.s32.totalorder %s15, 0
    %p98 = por %p96, %p97
    %s99 = ssub.s32 %s16, %s28
    %s100 = ssub.s32 %s17, %s24
    %s101 = sor.u32 %s99, %s100
    %p102 = scmp.eq.s32.totalorder %s101, 0
    %s104 = sadd.s32 %s103, 1
    %s105 = scalar_select %p102, %s103, %s104
    %p108 = pneg %p102
    %p109 = scmp.eq.s32.totalorder %s9, 1
    %p110 = por %p108, %p109
    %p111 = scmp.ne.s32.totalorder %s103, %s106
    %p112 = scmp.eq.s32.totalorder %s9, 0
    %p113 = por %p111, %p112
    %p114 = scmp.ne.s32.totalorder %s103, %s106
    %p115 = scmp.eq.s32.totalorder %s14, 1
    %p116 = por %p114, %p115
    %p117 = scmp.ne.s32.totalorder %s106, %s107
    %p118 = scmp.eq.s32.totalorder %s14, 0
    %p119 = por %p117, %p118
    %p120 = scmp.ne.s32.totalorder %s106, %s107
    %p121 = scmp.eq.s32.totalorder %s15, 1
    %p122 = por %p120, %p121
    %p124 = scmp.ne.s32.totalorder %s107, %s123
    %p125 = scmp.eq.s32.totalorder %s15, 0
    %p126 = por %p124, %p125
    %p127 = scmp.le.s32.totalorder 1, %s9
    %p128 = scmp.lt.s32.totalorder %s9, 3
    %p129 = pnand %p127, %p128
    %p130 = pneg %p129
    // Predicated region
    $region9: #{tpu_custom_call.1} parent=5 // pred_check
      _
    $region10: #{tpu_custom_call.1} parent=5 // pred_check_branch
      %132 = sbr.rel (%p129) target = $region12
    $region11: #{tpu_custom_call.1} parent=5 // pred_region
      %s133 = ssub.s32 %s9, 1
      // Predicated region
      $region13: #{tpu_custom_call.1} parent=11 // pred_check
        %p134 = pneg %p70
      $region14: #{tpu_custom_call.1} parent=11 // pred_check_branch
        %136 = sbr.rel (%p134) target = $region16
      $region15: #{tpu_custom_call.1} parent=11 // pred_region
        _
      $region16: #{tpu_custom_call.1} parent=11 // pred_fallthru
        _
      // Predicated region
      $region17: #{tpu_custom_call.1} parent=11 // pred_check
        %p137 = pneg %p91
      $region18: #{tpu_custom_call.1} parent=11 // pred_check_branch
        %139 = sbr.rel (%p137) target = $region20
      $region19: #{tpu_custom_call.1} parent=11 // pred_region
        _
      $region20: #{tpu_custom_call.1} parent=11 // pred_fallthru
        _
    $region12: #{tpu_custom_call.1} parent=5 // pred_fallthru
      _
    %p140 = scmp.lt.s32.totalorder %s9, 2
    // Predicated region
    $region21: #{tpu_custom_call.1} parent=5 // pred_check
      %p141 = pneg %p140
    $region22: #{tpu_custom_call.1} parent=5 // pred_check_branch
      %143 = sbr.rel (%p141) target = $region24
    $region23: #{tpu_custom_call.1} parent=5 // pred_region
      // Predicated region
      $region25: #{tpu_custom_call.1} parent=23 // pred_check
        %p144 = pneg %p43
      $region26: #{tpu_custom_call.1} parent=23 // pred_check_branch
        %146 = sbr.rel (%p144) target = $region28
      $region27: #{tpu_custom_call.1} parent=23 // pred_region
        %p147 = scmp.lt.s32.totalorder %s16, 1
        %s148 = scalar_select %p147, %s16, 1
        %p149 = scmp.lt.s32.totalorder %s17, 0
        %s150 = scalar_select %p149, %s17, 0
        %s151 = sadd.s32 %s150, %s148
        %s152 = smul.addr %s151, 4
        %s153 = scalar_lea.vmem %s0, %s152
      $region28: #{tpu_custom_call.1} parent=23 // pred_fallthru
        _
    $region24: #{tpu_custom_call.1} parent=5 // pred_fallthru
      _
    %p154 = scmp.le.s32.totalorder 1, %s9
    %p155 = scmp.lt.s32.totalorder %s9, 3
    %p156 = pnand %p154, %p155
    %p157 = pneg %p156
    // Predicated region
    $region29: #{tpu_custom_call.1} parent=5 // pred_check
      _
    $region30: #{tpu_custom_call.1} parent=5 // pred_check_branch
      %159 = sbr.rel (%p156) target = $region32
    $region31: #{tpu_custom_call.1} parent=5 // pred_region
      %s160 = ssub.s32 %s9, 1
      %p161 = scmp.lt.s32.totalorder %s18, 1
      %s162 = scalar_select %p161, %s18, 1
      %p163 = scmp.lt.s32.totalorder %s19, 0
      %s164 = scalar_select %p163, %s19, 0
      %s165 = sadd.s32 %s164, %s162
      %s166 = smul.addr %s165, 4
      %s167 = scalar_lea.vmem %s0, %s166
      %p168 = pneg %p49
      %p169 = pneg %p46
      %p170 = pneg %p70
      %p171 = pneg %p67
      %p172 = pneg %p91
      %p173 = pneg %p88
      %p174 = pneg %p119
      %p175 = pneg %p116
      %p176 = scmp.lt.s32.totalorder %s18, 1
      %s177 = scalar_select %p176, %s18, 1
      %p178 = scmp.lt.s32.totalorder %s19, 0
      %s179 = scalar_select %p178, %s19, 0
      %s180 = smul.addr %s177, 4
      %s181 = sadd.s32 %s179, %s180
      %s182 = smul.addr %s181, 8
      %s183 = scalar_lea.vmem %s3, %s182
      %p184 = scmp.lt.s32.totalorder %s18, 1
      %s185 = scalar_select %p184, %s18, 1
      %p186 = scmp.lt.s32.totalorder %s19, 0
      %s187 = scalar_select %p186, %s19, 0
      %s188 = sadd.s32 %s187, %s185
      %s189 = smul.addr %s188, 4
      %s190 = scalar_lea.vmem %s0, %s189
      %p191 = scmp.lt.s32.totalorder %s18, 1
      %s192 = scalar_select %p191, %s18, 1
      %p193 = scmp.lt.s32.totalorder %s19, 0
      %s194 = scalar_select %p193, %s19, 0
      %s195 = smul.addr %s192, 4
      %s196 = sadd.s32 %s194, %s195
      %s197 = smul.addr %s196, 8
      %s198 = scalar_lea.vmem %s3, %s197
      %v199 = vld [vmem:[%s190] sm:$0xf]
      %v200 = vld [vmem:[%s1] sm:$0xff]
      %v201 = vld [vmem:[%s1 + $0x8] sm:$0xff]
      %v202 = vld [vmem:[%s1 + $0x10] sm:$0xff]
      %v203 = vld [vmem:[%s1 + $0x18] sm:$0xff]
      %v204 = vld [vmem:[%s2] sm:$0xff]
      %v205 = vld [vmem:[%s2 + $0x8] sm:$0xff]
      %v206 = vld [vmem:[%s2 + $0x10] sm:$0xff]
      %v207 = vld [vmem:[%s2 + $0x18] sm:$0xff]
      %209 = vset.pattern.permute.xlu0 0
      %210 = vperm.xlu0 %209, %v204
      %v211 = vpop.permute.xlu0 %210
      %214 = vset.pattern.permute.xlu0 0
      %215 = vperm.xlu0 %214, %v205
      %v216 = vpop.permute.xlu0 %215
      %219 = vset.pattern.permute.xlu0 0
      %220 = vperm.xlu0 %219, %v206
      %v221 = vpop.permute.xlu0 %220
      %224 = vset.pattern.permute.xlu0 0
      %225 = vperm.xlu0 %224, %v207
      %v226 = vpop.permute.xlu0 %225
      %vm228 = vcmask 31744
      %v230 = vsel %vm228, %v200, 0
      %v233 = vsel %vm228, %v201, 0
      %v236 = vsel %vm228, %v202, 0
      %v239 = vsel %vm228, %v203, 0
      %vm241 = vcmask 1043456
      %v243 = vsel %vm241, %v199, 0
      %245 = vmatpush.msra.mxu0 0.0
      %246 = vmatpush.msra.mxu0 0.0
      %247 = vmatpush.msra.mxu0 0.0
      %248 = vmatpush.msra.mxu0 0.0
      %249 = vmatpush.msra.mxu0 0.0
      %250 = vmatpush.msra.mxu0 0.0
      %251 = vmatpush.msra.mxu0 0.0
      %252 = vmatpush.msra.mxu0 0.0
      %253 = vmatpush.msra.mxu0 0.0
      %254 = vmatpush.msra.mxu0 0.0
      %255 = vmatpush.msra.mxu0 0.0
      %256 = vmatpush.msra.mxu0 0.0
      %257 = vmatpush.msra.mxu0 0.0
      %258 = vmatpush.msra.mxu0 0.0
      %259 = vmatpush.msra.mxu0 0.0
      %260 = vmatpush.msra.mxu0 %v243
      %261 = vmatmul.f32.gmra.mxu0 %v230
      %v262 = vpop.f32.mrf.mxu0
      %v263 = vadd.f32 %v211, %v262
      %264 = vmatmul.f32.gmra.mxu0 %v233
      %v265 = vpop.f32.mrf.mxu0
      %v266 = vadd.f32 %v216, %v265
      %267 = vmatmul.f32.gmra.mxu0 %v236
      %v268 = vpop.f32.mrf.mxu0
      %v269 = vadd.f32 %v221, %v268
      %270 = vmatmul.f32.gmra.mxu0 %v239
      %v271 = vpop.f32.mrf.mxu0
      %v272 = vadd.f32 %v226, %v271
      %273 = vdwg.mxu0
      %v274 = vmax.f32 %v263, 0.0
      %v275 = vmax.f32 %v266, 0.0
      %v276 = vmax.f32 %v269, 0.0
      %v277 = vmax.f32 %v272, 0.0
      %vm278 = vcmask 130048
      %279 = vst.msk [vmem:[%s198] sm:$0xff] %vm278, %v274
      %280 = vst.msk [vmem:[%s198 + $0x8] sm:$0xff] %vm278, %v275
      %281 = vst.msk [vmem:[%s198 + $0x10] sm:$0xff] %vm278, %v276
      %282 = vst.msk [vmem:[%s198 + $0x18] sm:$0xff] %vm278, %v277
      %p283 = scmp.lt.s32.totalorder %s18, 1
      %s284 = scalar_select %p283, %s18, 1
      %p285 = scmp.lt.s32.totalorder %s19, 0
      %s286 = scalar_select %p285, %s19, 0
      %s287 = smul.addr %s284, 4
      %s288 = sadd.s32 %s286, %s287
      %s289 = smul.addr %s288, 8
      %s290 = scalar_lea.vmem %s3, %s289
      // Predicated region
      $region33: #{tpu_custom_call.1} parent=31 // pred_check
        %p291 = pneg %p116
      $region34: #{tpu_custom_call.1} parent=31 // pred_check_branch
        %293 = sbr.rel (%p291) target = $region36
      $region35: #{tpu_custom_call.1} parent=31 // pred_region
        _
      $region36: #{tpu_custom_call.1} parent=31 // pred_fallthru
        _
    $region32: #{tpu_custom_call.1} parent=5 // pred_fallthru
      _
    %p294 = scmp.le.s32.totalorder 2, %s9
    // Predicated region
    $region37: #{tpu_custom_call.1} parent=5 // pred_check
      %p295 = pneg %p294
    $region38: #{tpu_custom_call.1} parent=5 // pred_check_branch
      %297 = sbr.rel (%p295) target = $region40
    $region39: #{tpu_custom_call.1} parent=5 // pred_region
      %s298 = ssub.s32 %s9, 2
      // Predicated region
      $region41: #{tpu_custom_call.1} parent=39 // pred_check
        %p299 = pneg %p122
      $region42: #{tpu_custom_call.1} parent=39 // pred_check_branch
        %301 = sbr.rel (%p299) target = $region44
      $region43: #{tpu_custom_call.1} parent=39 // pred_region
        %p302 = scmp.lt.s32.totalorder %s20, 1
        %s303 = scalar_select %p302, %s20, 1
        %p304 = scmp.lt.s32.totalorder %s21, 0
        %s305 = scalar_select %p304, %s21, 0
        %s306 = smul.addr %s303, 4
        %s307 = sadd.s32 %s305, %s306
        %s308 = smul.addr %s307, 8
        %s309 = scalar_lea.vmem %s3, %s308
      $region44: #{tpu_custom_call.1} parent=39 // pred_fallthru
        _
    $region40: #{tpu_custom_call.1} parent=5 // pred_fallthru
      _
  $region6: #{tpu_custom_call.1} parent=0 // loop_footer
    %s13 = sadd.s32 1, %s9
  $region7: #{tpu_custom_call.1} parent=0 // loop_footer_branch
    %8 = sbr.rel target = $region3
  $region8: #{tpu_custom_call.1} parent=0 // loop_exit
    _

</llo_original>
